<compile_context>
chip_gen: v7x
topology: tpu7x:2x2x1
jax: 0.10.0
libtpu: 0.0.40
codegen_flags: <defaults>
</compile_context>

<pallas_src>
import functools

import jax
import jax.numpy as jnp
from jax import lax
from jax.experimental import pallas as pl
from jax.experimental.pallas import tpu as pltpu


def _round_up(x, m):
    return (x + m - 1) // m * m


def _make_contrast_kernel(n_valid_cols):
    """n_valid_cols = real B (number of positive rows / logits columns)."""
    neg_big = float(jnp.finfo(jnp.float32).min)

    def kernel(anchor_ref, positive_ref, w1_ref, b1_ref, w2_ref, b2_ref,
               w_ref, out_ref):
        a_bf = anchor_ref[...]                              # [TB, Dp] bf16
        a_f32 = a_bf.astype(jnp.float32)

        # anchor_mlp: Linear(D->H) + ReLU + Linear(H->D); bf16 in, f32 acc.
        h = jnp.dot(a_bf, w1_ref[...],
                    preferred_element_type=jnp.float32) + b1_ref[...]
        h = jnp.maximum(h, 0.0)                             # ReLU (f32, VPU)
        mlp_out = jnp.dot(h.astype(jnp.bfloat16), w2_ref[...],
                          preferred_element_type=jnp.float32) + b2_ref[...]

        # residual (f32), then bf16 for the next MXU pass
        a_res = (a_f32 + mlp_out).astype(jnp.bfloat16)      # [TB, Dp]

        # pred = W(anchor')  (bias-free)
        pred = jnp.dot(a_res, w_ref[...],
                       preferred_element_type=jnp.float32)  # [TB, Dp] f32

        # logits = pred @ positive^T : contract last dims directly, no transpose
        logits = lax.dot_general(
            pred.astype(jnp.bfloat16), positive_ref[...],
            dimension_numbers=(((1,), (1,)), ((), ())),
            preferred_element_type=jnp.float32)             # [TB, Bc] f32

        # row-wise max over the REAL columns only (padded positive rows masked)
        col = lax.broadcasted_iota(jnp.int32, logits.shape, 1)
        masked = jnp.where(col < n_valid_cols, logits, neg_big)
        out_ref[...] = logits - jnp.max(masked, axis=1, keepdims=True)

    return kernel


def contrast_model_pallas(anchor, positive, params, *, tb=256):
    """anchor, positive: [B, D] float32. params: dict of transposed weights."""
    B, D = anchor.shape
    H = params["w1"].shape[1]

    Dp = _round_up(D, 128)              # lane-dense feature dim
    Hp = _round_up(H, 128)              # lane-dense hidden dim
    Bc = _round_up(B, 128)              # lane-dense logits column dim
    TB = min(tb, _round_up(B, 8))       # anchor row tile (multiple of 8)
    Br = _round_up(B, TB)               # padded anchor rows (multiple of TB)

    bf16, f32 = jnp.bfloat16, jnp.float32

    # Zero-padding the feature axes is exact: padded lanes contribute 0 to every
    # contraction and padded bias lanes are 0.
    a_p = jnp.zeros((Br, Dp), bf16).at[:B, :D].set(anchor.astype(bf16))
    p_p = jnp.zeros((Bc, Dp), bf16).at[:B, :D].set(positive.astype(bf16))
    w1 = jnp.zeros((Dp, Hp), bf16).at[:D, :H].set(params["w1"].astype(bf16))
    b1 = jnp.zeros((1, Hp), f32).at[:, :H].set(params["b1"].astype(f32))
    w2 = jnp.zeros((Hp, Dp), bf16).at[:H, :D].set(params["w2"].astype(bf16))
    b2 = jnp.zeros((1, Dp), f32).at[:, :D].set(params["b2"].astype(f32))
    w = jnp.zeros((Dp, Dp), bf16).at[:D, :D].set(params["w"].astype(bf16))

    kernel = _make_contrast_kernel(B)

    out_p = pl.pallas_call(
        kernel,
        out_shape=jax.ShapeDtypeStruct((Br, Bc), jnp.float32),
        grid_spec=pltpu.PrefetchScalarGridSpec(
            num_scalar_prefetch=0,
            grid=(Br // TB,),
            in_specs=[
                pl.BlockSpec((TB, Dp), lambda i: (i, 0)),   # anchor row tile
                pl.BlockSpec((Bc, Dp), lambda i: (0, 0)),   # positive (resident)
                pl.BlockSpec((Dp, Hp), lambda i: (0, 0)),   # w1 (resident)
                pl.BlockSpec((1, Hp), lambda i: (0, 0)),    # b1
                pl.BlockSpec((Hp, Dp), lambda i: (0, 0)),   # w2
                pl.BlockSpec((1, Dp), lambda i: (0, 0)),    # b2
                pl.BlockSpec((Dp, Dp), lambda i: (0, 0)),   # W
            ],
            out_specs=pl.BlockSpec((TB, Bc), lambda i: (i, 0)),
        ),
        compiler_params=pltpu.CompilerParams(
            dimension_semantics=("parallel",),
            vmem_limit_bytes=64 * 1024 * 1024),
    )(a_p, p_p, w1, b1, w2, b2, w)

    # TODO(synk): for very large B on v7x (64 MiB VMEM) the resident positive /
    # Bc-wide logits tile would need column tiling + two-pass (online) row-max.
    return out_p[:B, :B]


def contrast_model_ref(anchor, positive, params, matmul_dtype=jnp.float32):
    """Pure-JAX reference mirroring the PyTorch forward.

    matmul_dtype=bfloat16 mirrors the kernel's MXU operand precision exactly
    (bf16 operands, f32 accumulation, f32 elementwise).
    """
    dt = matmul_dtype
    a = anchor.astype(dt)
    p = positive.astype(dt)
    w1, w2, w = (params["w1"].astype(dt), params["w2"].astype(dt),
                 params["w"].astype(dt))
    h = jnp.dot(a, w1, preferred_element_type=jnp.float32) + params["b1"]
    h = jnp.maximum(h, 0.0)
    mlp_out = jnp.dot(h.astype(dt), w2,
                      preferred_element_type=jnp.float32) + params["b2"]
    a_res = a.astype(jnp.float32) + mlp_out
    pred = jnp.dot(a_res.astype(dt), w, preferred_element_type=jnp.float32)
    logits = lax.dot_general(pred.astype(dt), p,
                             dimension_numbers=(((1,), (1,)), ((), ())),
                             preferred_element_type=jnp.float32)
    return logits - jnp.max(logits, axis=1, keepdims=True)


def init_params(key, latent_size, hidden_size):
    """Deterministic synthetic init (shapes match the nn.Module's __init__).

    Stored transposed [in, out] so the kernel computes y = x @ W (+ b).
    Biases kept 2-D [1, out] for TPU layout.
    """
    k1, k2, k3, k4, k5 = jax.random.split(key, 5)
    s1 = 1.0 / jnp.sqrt(latent_size)
    s2 = 1.0 / jnp.sqrt(hidden_size)
    return {
        "w1": jax.random.uniform(k1, (latent_size, hidden_size), jnp.float32, -s1, s1),
        "b1": jax.random.uniform(k2, (1, hidden_size), jnp.float32, -s1, s1),
        "w2": jax.random.uniform(k3, (hidden_size, latent_size), jnp.float32, -s2, s2),
        "b2": jax.random.uniform(k4, (1, latent_size), jnp.float32, -s2, s2),
        "w": jax.random.uniform(k5, (latent_size, latent_size), jnp.float32, -s1, s1),
    }


if __name__ == "__main__":
    B = 8              # batch (number of anchor/positive pairs)
    LATENT = 32        # latent_size
    HIDDEN = 64        # anchor_hidden_sizes = [64]

    key = jax.random.PRNGKey(0)
    k_anchor, k_positive, k_params = jax.random.split(key, 3)

    anchor = jax.random.normal(k_anchor, (B, LATENT), jnp.float32)
    positive = jax.random.normal(k_positive, (B, LATENT), jnp.float32)
    params = init_params(k_params, LATENT, HIDDEN)

    out = contrast_model_pallas(anchor, positive, params)
    out = jax.block_until_ready(out)
    assert out.shape == (B, B)

    # Tight check vs a reference using the same bf16-operand / f32-accum matmuls.
    ref_bf16 = contrast_model_ref(anchor, positive, params, jnp.bfloat16)
    assert jnp.allclose(out, ref_bf16, atol=1e-2, rtol=1e-2), "mismatch vs bf16 reference"

    # Loose sanity check vs the full-f32 PyTorch-equivalent forward.
    ref_f32 = contrast_model_ref(anchor, positive, params, jnp.float32)
    assert jnp.allclose(out, ref_f32, atol=0.5, rtol=0.05), "mismatch vs f32 reference"

    print("KERNEL_OK")
</pallas_src>

<mosaic_0001>
module attributes {stable_mosaic.version = 11 : i64} {
  func.func @kernel(%arg0: i32, %arg1: memref<8x128xbf16, #tpu.memory_space<vmem>>, %arg2: memref<128x128xbf16, #tpu.memory_space<vmem>>, %arg3: memref<128x128xbf16, #tpu.memory_space<vmem>>, %arg4: memref<1x128xf32, #tpu.memory_space<vmem>>, %arg5: memref<128x128xbf16, #tpu.memory_space<vmem>>, %arg6: memref<1x128xf32, #tpu.memory_space<vmem>>, %arg7: memref<128x128xbf16, #tpu.memory_space<vmem>>, %arg8: memref<8x128xf32, #tpu.memory_space<vmem>>) attributes {dimension_semantics = [#tpu.dimension_semantics<parallel>], iteration_bounds = array<i64: 1>, scalar_prefetch = 0 : i64, scratch_operands = 0 : i64, tpu.core_type = #tpu.core_type<tc>, window_params = [{transform_indices = @transform_0, window_bounds = array<i64: 8, 128>}, {pipeline_mode = #tpu.pipeline_mode<synchronous>, transform_indices = @transform_1, window_bounds = array<i64: 128, 128>}, {pipeline_mode = #tpu.pipeline_mode<synchronous>, transform_indices = @transform_2, window_bounds = array<i64: 128, 128>}, {pipeline_mode = #tpu.pipeline_mode<synchronous>, transform_indices = @transform_3, window_bounds = array<i64: 1, 128>}, {pipeline_mode = #tpu.pipeline_mode<synchronous>, transform_indices = @transform_4, window_bounds = array<i64: 128, 128>}, {pipeline_mode = #tpu.pipeline_mode<synchronous>, transform_indices = @transform_5, window_bounds = array<i64: 1, 128>}, {pipeline_mode = #tpu.pipeline_mode<synchronous>, transform_indices = @transform_6, window_bounds = array<i64: 128, 128>}, {transform_indices = @transform_7, window_bounds = array<i64: 8, 128>}]} {
    %c0 = arith.constant 0 : index
    %c0_0 = arith.constant 0 : index
    %0 = vector.load %arg1[%c0, %c0_0] : memref<8x128xbf16, #tpu.memory_space<vmem>>, vector<8x128xbf16>
    %1 = arith.extf %0 : vector<8x128xbf16> to vector<8x128xf32>
    %c0_1 = arith.constant 0 : index
    %c0_2 = arith.constant 0 : index
    %2 = vector.load %arg3[%c0_1, %c0_2] : memref<128x128xbf16, #tpu.memory_space<vmem>>, vector<128x128xbf16>
    %cst = arith.constant dense<0.000000e+00> : vector<8x128xf32>
    %3 = tpu.matmul %0, %2, %cst {dimension_numbers = #tpu.dot_dimension_numbers<[1], [0], [0], [1], [0, 0, 1, 1], [], []>} : vector<8x128xbf16>, vector<128x128xbf16>, vector<8x128xf32> -> vector<8x128xf32>
    %c0_3 = arith.constant 0 : index
    %c0_4 = arith.constant 0 : index
    %4 = vector.load %arg4[%c0_3, %c0_4] : memref<1x128xf32, #tpu.memory_space<vmem>>, vector<1x128xf32>
    %5 = vector.broadcast %4 : vector<1x128xf32> to vector<8x128xf32>
    %6 = arith.addf %3, %5 : vector<8x128xf32>
    %cst_5 = arith.constant 0.000000e+00 : f32
    %7 = vector.broadcast %cst_5 : f32 to vector<8x128xf32>
    %8 = arith.maximumf %6, %7 : vector<8x128xf32>
    %9 = arith.truncf %8 : vector<8x128xf32> to vector<8x128xbf16>
    %c0_6 = arith.constant 0 : index
    %c0_7 = arith.constant 0 : index
    %10 = vector.load %arg5[%c0_6, %c0_7] : memref<128x128xbf16, #tpu.memory_space<vmem>>, vector<128x128xbf16>
    %cst_8 = arith.constant dense<0.000000e+00> : vector<8x128xf32>
    %11 = tpu.matmul %9, %10, %cst_8 {dimension_numbers = #tpu.dot_dimension_numbers<[1], [0], [0], [1], [0, 0, 1, 1], [], []>} : vector<8x128xbf16>, vector<128x128xbf16>, vector<8x128xf32> -> vector<8x128xf32>
    %c0_9 = arith.constant 0 : index
    %c0_10 = arith.constant 0 : index
    %12 = vector.load %arg6[%c0_9, %c0_10] : memref<1x128xf32, #tpu.memory_space<vmem>>, vector<1x128xf32>
    %13 = vector.broadcast %12 : vector<1x128xf32> to vector<8x128xf32>
    %14 = arith.addf %11, %13 : vector<8x128xf32>
    %15 = arith.addf %1, %14 : vector<8x128xf32>
    %16 = arith.truncf %15 : vector<8x128xf32> to vector<8x128xbf16>
    %c0_11 = arith.constant 0 : index
    %c0_12 = arith.constant 0 : index
    %17 = vector.load %arg7[%c0_11, %c0_12] : memref<128x128xbf16, #tpu.memory_space<vmem>>, vector<128x128xbf16>
    %cst_13 = arith.constant dense<0.000000e+00> : vector<8x128xf32>
    %18 = tpu.matmul %16, %17, %cst_13 {dimension_numbers = #tpu.dot_dimension_numbers<[1], [0], [0], [1], [0, 0, 1, 1], [], []>} : vector<8x128xbf16>, vector<128x128xbf16>, vector<8x128xf32> -> vector<8x128xf32>
    %19 = arith.truncf %18 : vector<8x128xf32> to vector<8x128xbf16>
    %c0_14 = arith.constant 0 : index
    %c0_15 = arith.constant 0 : index
    %20 = vector.load %arg2[%c0_14, %c0_15] : memref<128x128xbf16, #tpu.memory_space<vmem>>, vector<128x128xbf16>
    %cst_16 = arith.constant dense<0.000000e+00> : vector<8x128xf32>
    %21 = tpu.matmul %19, %20, %cst_16 {dimension_numbers = #tpu.dot_dimension_numbers<[1], [1], [0], [0], [0, 0, 1, 0], [], []>} : vector<8x128xbf16>, vector<128x128xbf16>, vector<8x128xf32> -> vector<8x128xf32>
    %22 = tpu.iota {dimensions = array<i32: 1>} : vector<8x128xi32>
    %c8_i32 = arith.constant 8 : i32
    %23 = vector.broadcast %c8_i32 : i32 to vector<8x128xi32>
    %24 = arith.cmpi slt, %22, %23 : vector<8x128xi32>
    %cst_17 = arith.constant -3.40282347E+38 : f32
    %25 = vector.broadcast %cst_17 : f32 to vector<8x128xf32>
    %26 = arith.select %24, %21, %25 : vector<8x128xi1>, vector<8x128xf32>
    %cst_18 = arith.constant dense<0xFF800000> : vector<8xf32>
    %27 = vector.multi_reduction <maximumf>, %26, %cst_18 [1] : vector<8x128xf32> to vector<8xf32>
    %28 = vector.shape_cast %27 : vector<8xf32> to vector<8x1xf32>
    %29 = vector.broadcast %28 : vector<8x1xf32> to vector<8x128xf32>
    %30 = arith.subf %21, %29 : vector<8x128xf32>
    %c0_19 = arith.constant 0 : index
    %c0_20 = arith.constant 0 : index
    %31 = vector.load %arg8[%c0_19, %c0_20] : memref<8x128xf32, #tpu.memory_space<vmem>>, vector<8x128xf32>
    tpu.vector_store %arg8[%c0_19, %c0_20], %30 {strides = array<i32>} : memref<8x128xf32, #tpu.memory_space<vmem>>, vector<8x128xf32>,
    return
  }
  func.func @transform_0(%arg0: i32) -> (i32, i32) {
    %c0_i32 = arith.constant 0 : i32
    %c0_i32_0 = arith.constant 0 : i32
    return %arg0, %c0_i32 : i32, i32
  }
  func.func @transform_1(%arg0: i32) -> (i32, i32) {
    %c0_i32 = arith.constant 0 : i32
    %c0_i32_0 = arith.constant 0 : i32
    %c0_i32_1 = arith.constant 0 : i32
    return %c0_i32, %c0_i32_0 : i32, i32
  }
  func.func @transform_2(%arg0: i32) -> (i32, i32) {
    %c0_i32 = arith.constant 0 : i32
    %c0_i32_0 = arith.constant 0 : i32
    %c0_i32_1 = arith.constant 0 : i32
    return %c0_i32, %c0_i32_0 : i32, i32
  }
  func.func @transform_3(%arg0: i32) -> (i32, i32) {
    %c0_i32 = arith.constant 0 : i32
    %c0_i32_0 = arith.constant 0 : i32
    %c0_i32_1 = arith.constant 0 : i32
    return %c0_i32, %c0_i32_0 : i32, i32
  }
  func.func @transform_4(%arg0: i32) -> (i32, i32) {
    %c0_i32 = arith.constant 0 : i32
    %c0_i32_0 = arith.constant 0 : i32
    %c0_i32_1 = arith.constant 0 : i32
    return %c0_i32, %c0_i32_0 : i32, i32
  }
  func.func @transform_5(%arg0: i32) -> (i32, i32) {
    %c0_i32 = arith.constant 0 : i32
    %c0_i32_0 = arith.constant 0 : i32
    %c0_i32_1 = arith.constant 0 : i32
    return %c0_i32, %c0_i32_0 : i32, i32
  }
  func.func @transform_6(%arg0: i32) -> (i32, i32) {
    %c0_i32 = arith.constant 0 : i32
    %c0_i32_0 = arith.constant 0 : i32
    %c0_i32_1 = arith.constant 0 : i32
    return %c0_i32, %c0_i32_0 : i32, i32
  }
  func.func @transform_7(%arg0: i32) -> (i32, i32) {
    %c0_i32 = arith.constant 0 : i32
    %c0_i32_0 = arith.constant 0 : i32
    return %arg0, %c0_i32 : i32, i32
  }
}

</mosaic_0001>

<llo_original>
// kernel: tpu_custom_call.1
$region0: #{tpu_custom_call.1}
  #allocation0 [shape = 'u32[]', space=smem, size = 0x4, offset = 0x4, fixed_abs, tag = 'smem constant byte address 0x4 - core index']
  #allocation1 [shape = 'u32[144,128]{1,0:T(1,128)}', space=vmem, size = 0x12000, scoped, tag = 'internal scratch']
  %s0 = inlined_call_operand.hbm [shape: bf16[8,128], index: 0, kind: input, shape index: {}]
  %s1 = inlined_call_operand.hbm [shape: bf16[128,128], index: 1, kind: input, shape index: {}]
  %s2 = inlined_call_operand.hbm [shape: bf16[128,128], index: 2, kind: input, shape index: {}]
  %s3 = inlined_call_operand.hbm [shape: f32[1,128], index: 3, kind: input, shape index: {}]
  %s4 = inlined_call_operand.hbm [shape: bf16[128,128], index: 4, kind: input, shape index: {}]
  %s5 = inlined_call_operand.hbm [shape: f32[1,128], index: 5, kind: input, shape index: {}]
  %s6 = inlined_call_operand.hbm [shape: bf16[128,128], index: 6, kind: input, shape index: {}]
  %s7 = inlined_call_operand.hbm [shape: f32[8,128], index: 7, kind: output, shape index: {}]
  %s8 = sld [smem:[#allocation0]]
  $region66: #{tpu_custom_call.1} parent=0
    _
  %s10 = ssub.s32 1, %s8
  %s11 = scalar_select 0, %s10, %s8
  $region1: #{tpu_custom_call.1} parent=0
    #allocation2 [shape = 'u8[2048]{0}', space=vmem, size = 0x800, scoped, tag = 'input window, operand 0, single buffered']
    #allocation3 [shape = 's32[1]{0}', space=sflag, size = 0x4, scoped, tag = 'scoped memory for tpu_custom_call.1']
    #allocation4 [shape = 's32[1]{0}', space=sflag, size = 0x4, scoped, tag = 'scoped memory for tpu_custom_call.1']
    #allocation5 [shape = 'u8[32768]{0}', space=vmem, size = 0x8000, scoped, tag = 'input window, operand 1, single buffered']
    #allocation6 [shape = 's32[1]{0}', space=sflag, size = 0x4, scoped, tag = 'scoped memory for tpu_custom_call.1']
    #allocation7 [shape = 'u8[32768]{0}', space=vmem, size = 0x8000, scoped, tag = 'input window, operand 2, single buffered']
    #allocation8 [shape = 'u8[512]{0}', space=vmem, size = 0x400, scoped, tag = 'input window, operand 3, single buffered']
    #allocation9 [shape = 's32[1]{0}', space=sflag, size = 0x4, scoped, tag = 'scoped memory for tpu_custom_call.1']
    #allocation10 [shape = 'u8[32768]{0}', space=vmem, size = 0x8000, scoped, tag = 'input window, operand 4, single buffered']
    #allocation11 [shape = 'u8[512]{0}', space=vmem, size = 0x400, scoped, tag = 'input window, operand 5, single buffered']
    #allocation12 [shape = 's32[1]{0}', space=sflag, size = 0x4, scoped, tag = 'scoped memory for tpu_custom_call.1']
    #allocation13 [shape = 'u8[32768]{0}', space=vmem, size = 0x8000, scoped, tag = 'input window, operand 6, single buffered']
    #allocation14 [shape = 'u8[4096]{0}', space=vmem, size = 0x1000, scoped, tag = 'output window, operand 0, single buffered']
    %12 = vsyncpa [#allocation3], 0
    %13 = vsyncpa [#allocation6], 0
    %14 = vsyncpa [#allocation9], 0
    %15 = vsyncpa [#allocation12], 0
    %16 = vsyncpa [#allocation4], 0
    // Predicated region
    $region2: #{tpu_custom_call.1} parent=1 // pred_check
      _
    $region3: #{tpu_custom_call.1} parent=1 // pred_check_branch
      %18 = sbr.rel (0) target = $region5
    $region4: #{tpu_custom_call.1} parent=1 // pred_region
      %s20 = ssub.s32 64, 64
      %21 = vsyncadd [#allocation3], %s20
      %s23 = sshll.u32 [#allocation2], 4
      %s24 = int_to_ptr.vmem [resolvable:$true] %s23
      %26 = dma.hbm_to_vmem [thread:$0]  %s0, 64, %s24, [#allocation3]
    $region5: #{tpu_custom_call.1} parent=1 // pred_fallthru
      _
    // Predicated region
    $region6: #{tpu_custom_call.1} parent=1 // pred_check
      _
    $region7: #{tpu_custom_call.1} parent=1 // pred_check_branch
      %28 = sbr.rel (0) target = $region9
    $region8: #{tpu_custom_call.1} parent=1 // pred_region
      %s30 = ssub.s32 1024, 1024
      %31 = vsyncadd [#allocation6], %s30
      %s32 = sshll.u32 [#allocation5], 4
      %s33 = int_to_ptr.vmem [resolvable:$true] %s32
      %38 = dma.hbm_to_vmem [thread:$0]  %s1, 1024, %s33, [#allocation6], 64, 64, 4
    $region9: #{tpu_custom_call.1} parent=1 // pred_fallthru
      _
    // Predicated region
    $region10: #{tpu_custom_call.1} parent=1 // pred_check
      _
    $region11: #{tpu_custom_call.1} parent=1 // pred_check_branch
      %40 = sbr.rel (0) target = $region13
    $region12: #{tpu_custom_call.1} parent=1 // pred_region
      %s42 = ssub.s32 1024, 1024
      %43 = vsyncadd [#allocation6], %s42
      %s44 = sshll.u32 [#allocation7], 4
      %s45 = int_to_ptr.vmem [resolvable:$true] %s44
      %50 = dma.hbm_to_vmem [thread:$0]  %s2, 1024, %s45, [#allocation6], 64, 64, 4
    $region13: #{tpu_custom_call.1} parent=1 // pred_fallthru
      _
    // Predicated region
    $region14: #{tpu_custom_call.1} parent=1 // pred_check
      _
    $region15: #{tpu_custom_call.1} parent=1 // pred_check_branch
      %52 = sbr.rel (0) target = $region17
    $region16: #{tpu_custom_call.1} parent=1 // pred_region
      %s54 = ssub.s32 16, 16
      %55 = vsyncadd [#allocation9], %s54
      %s57 = sshll.u32 [#allocation8], 4
      %s58 = int_to_ptr.vmem [resolvable:$true] %s57
      %60 = dma.hbm_to_vmem [thread:$0]  %s3, 16, %s58, [#allocation9]
    $region17: #{tpu_custom_call.1} parent=1 // pred_fallthru
      _
    // Predicated region
    $region18: #{tpu_custom_call.1} parent=1 // pred_check
      _
    $region19: #{tpu_custom_call.1} parent=1 // pred_check_branch
      %62 = sbr.rel (0) target = $region21
    $region20: #{tpu_custom_call.1} parent=1 // pred_region
      %s64 = ssub.s32 1024, 1024
      %65 = vsyncadd [#allocation9], %s64
      %s66 = sshll.u32 [#allocation10], 4
      %s67 = int_to_ptr.vmem [resolvable:$true] %s66
      %72 = dma.hbm_to_vmem [thread:$0]  %s4, 1024, %s67, [#allocation9], 64, 64, 4
    $region21: #{tpu_custom_call.1} parent=1 // pred_fallthru
      _
    // Predicated region
    $region22: #{tpu_custom_call.1} parent=1 // pred_check
      _
    $region23: #{tpu_custom_call.1} parent=1 // pred_check_branch
      %74 = sbr.rel (0) target = $region25
    $region24: #{tpu_custom_call.1} parent=1 // pred_region
      %s76 = ssub.s32 16, 16
      %77 = vsyncadd [#allocation12], %s76
      %s79 = sshll.u32 [#allocation11], 4
      %s80 = int_to_ptr.vmem [resolvable:$true] %s79
      %82 = dma.hbm_to_vmem [thread:$0]  %s5, 16, %s80, [#allocation12]
    $region25: #{tpu_custom_call.1} parent=1 // pred_fallthru
      _
    // Predicated region
    $region26: #{tpu_custom_call.1} parent=1 // pred_check
      _
    $region27: #{tpu_custom_call.1} parent=1 // pred_check_branch
      %84 = sbr.rel (0) target = $region29
    $region28: #{tpu_custom_call.1} parent=1 // pred_region
      %s86 = ssub.s32 1024, 1024
      %87 = vsyncadd [#allocation12], %s86
      %s88 = sshll.u32 [#allocation13], 4
      %s89 = int_to_ptr.vmem [resolvable:$true] %s88
      %94 = dma.hbm_to_vmem [thread:$0]  %s6, 1024, %s89, [#allocation12], 64, 64, 4
    $region29: #{tpu_custom_call.1} parent=1 // pred_fallthru
      _
    // Predicated region
    $region30: #{tpu_custom_call.1} parent=1 // pred_check
      _
    $region31: #{tpu_custom_call.1} parent=1 // pred_check_branch
      %96 = sbr.rel (0) target = $region33
    $region32: #{tpu_custom_call.1} parent=1 // pred_region
      %97 = dma.done [#allocation3], 64
    $region33: #{tpu_custom_call.1} parent=1 // pred_fallthru
      _
    // Predicated region
    $region34: #{tpu_custom_call.1} parent=1 // pred_check
      _
    $region35: #{tpu_custom_call.1} parent=1 // pred_check_branch
      %99 = sbr.rel (0) target = $region37
    $region36: #{tpu_custom_call.1} parent=1 // pred_region
      %100 = dma.done [#allocation6], 1024
    $region37: #{tpu_custom_call.1} parent=1 // pred_fallthru
      _
    // Predicated region
    $region38: #{tpu_custom_call.1} parent=1 // pred_check
      _
    $region39: #{tpu_custom_call.1} parent=1 // pred_check_branch
      %102 = sbr.rel (0) target = $region41
    $region40: #{tpu_custom_call.1} parent=1 // pred_region
      %103 = dma.done [#allocation6], 1024
    $region41: #{tpu_custom_call.1} parent=1 // pred_fallthru
      _
    // Predicated region
    $region42: #{tpu_custom_call.1} parent=1 // pred_check
      _
    $region43: #{tpu_custom_call.1} parent=1 // pred_check_branch
      %105 = sbr.rel (0) target = $region45
    $region44: #{tpu_custom_call.1} parent=1 // pred_region
      %106 = dma.done [#allocation9], 16
    $region45: #{tpu_custom_call.1} parent=1 // pred_fallthru
      _
    // Predicated region
    $region46: #{tpu_custom_call.1} parent=1 // pred_check
      _
    $region47: #{tpu_custom_call.1} parent=1 // pred_check_branch
      %108 = sbr.rel (0) target = $region49
    $region48: #{tpu_custom_call.1} parent=1 // pred_region
      %109 = dma.done [#allocation9], 1024
    $region49: #{tpu_custom_call.1} parent=1 // pred_fallthru
      _
    // Predicated region
    $region50: #{tpu_custom_call.1} parent=1 // pred_check
      _
    $region51: #{tpu_custom_call.1} parent=1 // pred_check_branch
      %111 = sbr.rel (0) target = $region53
    $region52: #{tpu_custom_call.1} parent=1 // pred_region
      %112 = dma.done [#allocation12], 16
    $region53: #{tpu_custom_call.1} parent=1 // pred_fallthru
      _
    // Predicated region
    $region54: #{tpu_custom_call.1} parent=1 // pred_check
      _
    $region55: #{tpu_custom_call.1} parent=1 // pred_check_branch
      %114 = sbr.rel (0) target = $region57
    $region56: #{tpu_custom_call.1} parent=1 // pred_region
      %115 = dma.done [#allocation12], 1024
    $region57: #{tpu_custom_call.1} parent=1 // pred_fallthru
      _
    %v117 = vld [vmem:[#allocation2] sm:$0xf]
    %v118 = vunpack.c.l.bf16 %v117
    %v119 = vld [vmem:[#allocation7] sm:$0xf]
    %v120 = vld [vmem:[#allocation7 + $0x4] sm:$0xf]
    %v121 = vld [vmem:[#allocation7 + $0x8] sm:$0xf]
    %v122 = vld [vmem:[#allocation7 + $0xc] sm:$0xf]
    %v123 = vld [vmem:[#allocation7 + $0x10] sm:$0xf]
    %v124 = vld [vmem:[#allocation7 + $0x14] sm:$0xf]
    %v125 = vld [vmem:[#allocation7 + $0x18] sm:$0xf]
    %v126 = vld [vmem:[#allocation7 + $0x1c] sm:$0xf]
    %v127 = vld [vmem:[#allocation7 + $0x20] sm:$0xf]
    %v128 = vld [vmem:[#allocation7 + $0x24] sm:$0xf]
    %v129 = vld [vmem:[#allocation7 + $0x28] sm:$0xf]
    %v130 = vld [vmem:[#allocation7 + $0x2c] sm:$0xf]
    %v131 = vld [vmem:[#allocation7 + $0x30] sm:$0xf]
    %v132 = vld [vmem:[#allocation7 + $0x34] sm:$0xf]
    %v133 = vld [vmem:[#allocation7 + $0x38] sm:$0xf]
    %v134 = vld [vmem:[#allocation7 + $0x3c] sm:$0xf]
    %v135 = vld [vmem:[#allocation8] sm:$0x1]
    %v137 = vlaneseq
    %v138 = vshrl.u32 %v137, 7
    %v139 = vsub.s32 0, %v138
    %v140 = vrot.slane %v135, %v139
    %v158 = vunpack.c.l.b16 %v119
    %v159 = vunpack.c.l.b16 %v120
    %v160 = vunpack.c.l.b16 %v121
    %v161 = vunpack.c.l.b16 %v122
    %v162 = vunpack.c.l.b16 %v123
    %v163 = vunpack.c.l.b16 %v124
    %v164 = vunpack.c.l.b16 %v125
    %v165 = vunpack.c.l.b16 %v126
    %v166 = vunpack.c.l.b16 %v127
    %v167 = vunpack.c.l.b16 %v128
    %v168 = vunpack.c.l.b16 %v129
    %v169 = vunpack.c.l.b16 %v130
    %v170 = vunpack.c.l.b16 %v131
    %v171 = vunpack.c.l.b16 %v132
    %v172 = vunpack.c.l.b16 %v133
    %v173 = vunpack.c.l.b16 %v134
    %v174 = vpack.c.b16 %v159, %v158
    %v175 = vpack.c.b16 %v161, %v160
    %v176 = vpack.c.b16 %v163, %v162
    %v177 = vpack.c.b16 %v165, %v164
    %v178 = vpack.c.b16 %v167, %v166
    %v179 = vpack.c.b16 %v169, %v168
    %v180 = vpack.c.b16 %v171, %v170
    %v181 = vpack.c.b16 %v173, %v172
    %190 = vmatprep.subr.bf16.mxu0 0
    %191 = vmatpush1.bf16.msra.mxu0 %v174
    %192 = vmatprep.subr.bf16.mxu0 0
    %193 = vmatpush1.bf16.msra.mxu0 %v175
    %194 = vmatprep.subr.bf16.mxu0 0
    %195 = vmatpush1.bf16.msra.mxu0 %v176
    %196 = vmatprep.subr.bf16.mxu0 0
    %197 = vmatpush1.bf16.msra.mxu0 %v177
    %198 = vmatprep.subr.bf16.mxu0 0
    %199 = vmatpush1.bf16.msra.mxu0 %v178
    %200 = vmatprep.subr.bf16.mxu0 0
    %201 = vmatpush1.bf16.msra.mxu0 %v179
    %202 = vmatprep.subr.bf16.mxu0 0
    %203 = vmatpush1.bf16.msra.mxu0 %v180
    %204 = vmatprep.subr.bf16.mxu0 0
    %205 = vmatpush1.bf16.msra.mxu0 %v181
    %206 = vmatprep.subr.bf16.mxu0 0
    %207 = vmatpush1.bf16.msra.mxu0 0
    %208 = vmatprep.subr.bf16.mxu0 0
    %209 = vmatpush1.bf16.msra.mxu0 0
    %210 = vmatprep.subr.bf16.mxu0 0
    %211 = vmatpush1.bf16.msra.mxu0 0
    %212 = vmatprep.subr.bf16.mxu0 0
    %213 = vmatpush1.bf16.msra.mxu0 0
    %214 = vmatprep.subr.bf16.mxu0 0
    %215 = vmatpush1.bf16.msra.mxu0 0
    %216 = vmatprep.subr.bf16.mxu0 0
    %217 = vmatpush1.bf16.msra.mxu0 0
    %218 = vmatprep.subr.bf16.mxu0 0
    %219 = vmatpush1.bf16.msra.mxu0 0
    %220 = vmatprep.subr.bf16.mxu0 0
    %221 = vmatpush1.bf16.msra.mxu0 0
    %222 = vmatprep.mubr.bf16.mxu0 0
    %223 = vmatmul.mubr.bf16.gmra.mrb[0].mxu0 %v117
    %v224 = vpop.f32.mrb[0].mxu0
    %v225 = vadd.f32 %v140, %v224
    %v226 = vpop.f32.mrb[0].mxu0
    %v227 = vpop.f32.mrb[0].mxu0
    %v228 = vpop.f32.mrb[0].mxu0
    %229 = vdwg.mxu0
    %v230 = vmax.f32 %v225, 0.0
    %v231 = vpack.c.bf16 %v230, %v230
    %v232 = vld [vmem:[#allocation10] sm:$0xf]
    %v233 = vld [vmem:[#allocation10 + $0x4] sm:$0xf]
    %v234 = vld [vmem:[#allocation10 + $0x8] sm:$0xf]
    %v235 = vld [vmem:[#allocation10 + $0xc] sm:$0xf]
    %v236 = vld [vmem:[#allocation10 + $0x10] sm:$0xf]
    %v237 = vld [vmem:[#allocation10 + $0x14] sm:$0xf]
    %v238 = vld [vmem:[#allocation10 + $0x18] sm:$0xf]
    %v239 = vld [vmem:[#allocation10 + $0x1c] sm:$0xf]
    %v240 = vld [vmem:[#allocation10 + $0x20] sm:$0xf]
    %v241 = vld [vmem:[#allocation10 + $0x24] sm:$0xf]
    %v242 = vld [vmem:[#allocation10 + $0x28] sm:$0xf]
    %v243 = vld [vmem:[#allocation10 + $0x2c] sm:$0xf]
    %v244 = vld [vmem:[#allocation10 + $0x30] sm:$0xf]
    %v245 = vld [vmem:[#allocation10 + $0x34] sm:$0xf]
    %v246 = vld [vmem:[#allocation10 + $0x38] sm:$0xf]
    %v247 = vld [vmem:[#allocation10 + $0x3c] sm:$0xf]
    %v248 = vld [vmem:[#allocation11] sm:$0x1]
    %v250 = vlaneseq
    %v251 = vshrl.u32 %v250, 7
    %v252 = vsub.s32 0, %v251
    %v253 = vrot.slane %v248, %v252
    %v271 = vunpack.c.l.b16 %v232
    %v272 = vunpack.c.l.b16 %v233
    %v273 = vunpack.c.l.b16 %v234
    %v274 = vunpack.c.l.b16 %v235
    %v275 = vunpack.c.l.b16 %v236
    %v276 = vunpack.c.l.b16 %v237
    %v277 = vunpack.c.l.b16 %v238
    %v278 = vunpack.c.l.b16 %v239
    %v279 = vunpack.c.l.b16 %v240
    %v280 = vunpack.c.l.b16 %v241
    %v281 = vunpack.c.l.b16 %v242
    %v282 = vunpack.c.l.b16 %v243
    %v283 = vunpack.c.l.b16 %v244
    %v284 = vunpack.c.l.b16 %v245
    %v285 = vunpack.c.l.b16 %v246
    %v286 = vunpack.c.l.b16 %v247
    %v287 = vpack.c.b16 %v272, %v271
    %v288 = vpack.c.b16 %v274, %v273
    %v289 = vpack.c.b16 %v276, %v275
    %v290 = vpack.c.b16 %v278, %v277
    %v291 = vpack.c.b16 %v280, %v279
    %v292 = vpack.c.b16 %v282, %v281
    %v293 = vpack.c.b16 %v284, %v283
    %v294 = vpack.c.b16 %v286, %v285
    %303 = vmatprep.subr.bf16.mxu0 0
    %304 = vmatpush1.bf16.msra.mxu0 %v287
    %305 = vmatprep.subr.bf16.mxu0 0
    %306 = vmatpush1.bf16.msra.mxu0 %v288
    %307 = vmatprep.subr.bf16.mxu0 0
    %308 = vmatpush1.bf16.msra.mxu0 %v289
    %309 = vmatprep.subr.bf16.mxu0 0
    %310 = vmatpush1.bf16.msra.mxu0 %v290
    %311 = vmatprep.subr.bf16.mxu0 0
    %312 = vmatpush1.bf16.msra.mxu0 %v291
    %313 = vmatprep.subr.bf16.mxu0 0
    %314 = vmatpush1.bf16.msra.mxu0 %v292
    %315 = vmatprep.subr.bf16.mxu0 0
    %316 = vmatpush1.bf16.msra.mxu0 %v293
    %317 = vmatprep.subr.bf16.mxu0 0
    %318 = vmatpush1.bf16.msra.mxu0 %v294
    %319 = vmatprep.subr.bf16.mxu0 0
    %320 = vmatpush1.bf16.msra.mxu0 0
    %321 = vmatprep.subr.bf16.mxu0 0
    %322 = vmatpush1.bf16.msra.mxu0 0
    %323 = vmatprep.subr.bf16.mxu0 0
    %324 = vmatpush1.bf16.msra.mxu0 0
    %325 = vmatprep.subr.bf16.mxu0 0
    %326 = vmatpush1.bf16.msra.mxu0 0
    %327 = vmatprep.subr.bf16.mxu0 0
    %328 = vmatpush1.bf16.msra.mxu0 0
    %329 = vmatprep.subr.bf16.mxu0 0
    %330 = vmatpush1.bf16.msra.mxu0 0
    %331 = vmatprep.subr.bf16.mxu0 0
    %332 = vmatpush1.bf16.msra.mxu0 0
    %333 = vmatprep.subr.bf16.mxu0 0
    %334 = vmatpush1.bf16.msra.mxu0 0
    %335 = vmatprep.mubr.bf16.mxu0 0
    %336 = vmatmul.mubr.bf16.gmra.mrb[0].mxu0 %v231
    %v337 = vpop.f32.mrb[0].mxu0
    %v338 = vadd.f32 %v253, %v337
    %v339 = vpop.f32.mrb[0].mxu0
    %v340 = vpop.f32.mrb[0].mxu0
    %v341 = vpop.f32.mrb[0].mxu0
    %342 = vdwg.mxu0
    %v343 = vadd.f32 %v118, %v338
    %v344 = vpack.c.bf16 %v343, %v343
    %v345 = vld [vmem:[#allocation13] sm:$0xf]
    %v346 = vld [vmem:[#allocation13 + $0x4] sm:$0xf]
    %v347 = vld [vmem:[#allocation13 + $0x8] sm:$0xf]
    %v348 = vld [vmem:[#allocation13 + $0xc] sm:$0xf]
    %v349 = vld [vmem:[#allocation13 + $0x10] sm:$0xf]
    %v350 = vld [vmem:[#allocation13 + $0x14] sm:$0xf]
    %v351 = vld [vmem:[#allocation13 + $0x18] sm:$0xf]
    %v352 = vld [vmem:[#allocation13 + $0x1c] sm:$0xf]
    %v353 = vld [vmem:[#allocation13 + $0x20] sm:$0xf]
    %v354 = vld [vmem:[#allocation13 + $0x24] sm:$0xf]
    %v355 = vld [vmem:[#allocation13 + $0x28] sm:$0xf]
    %v356 = vld [vmem:[#allocation13 + $0x2c] sm:$0xf]
    %v357 = vld [vmem:[#allocation13 + $0x30] sm:$0xf]
    %v358 = vld [vmem:[#allocation13 + $0x34] sm:$0xf]
    %v359 = vld [vmem:[#allocation13 + $0x38] sm:$0xf]
    %v360 = vld [vmem:[#allocation13 + $0x3c] sm:$0xf]
    %v377 = vunpack.c.l.b16 %v345
    %v378 = vunpack.c.l.b16 %v346
    %v379 = vunpack.c.l.b16 %v347
    %v380 = vunpack.c.l.b16 %v348
    %v381 = vunpack.c.l.b16 %v349
    %v382 = vunpack.c.l.b16 %v350
    %v383 = vunpack.c.l.b16 %v351
    %v384 = vunpack.c.l.b16 %v352
    %v385 = vunpack.c.l.b16 %v353
    %v386 = vunpack.c.l.b16 %v354
    %v387 = vunpack.c.l.b16 %v355
    %v388 = vunpack.c.l.b16 %v356
    %v389 = vunpack.c.l.b16 %v357
    %v390 = vunpack.c.l.b16 %v358
    %v391 = vunpack.c.l.b16 %v359
    %v392 = vunpack.c.l.b16 %v360
    %v393 = vpack.c.b16 %v378, %v377
    %v394 = vpack.c.b16 %v380, %v379
    %v395 = vpack.c.b16 %v382, %v381
    %v396 = vpack.c.b16 %v384, %v383
    %v397 = vpack.c.b16 %v386, %v385
    %v398 = vpack.c.b16 %v388, %v387
    %v399 = vpack.c.b16 %v390, %v389
    %v400 = vpack.c.b16 %v392, %v391
    %409 = vmatprep.subr.bf16.mxu0 0
    %410 = vmatpush1.bf16.msra.mxu0 %v393
    %411 = vmatprep.subr.bf16.mxu0 0
    %412 = vmatpush1.bf16.msra.mxu0 %v394
    %413 = vmatprep.subr.bf16.mxu0 0
    %414 = vmatpush1.bf16.msra.mxu0 %v395
    %415 = vmatprep.subr.bf16.mxu0 0
    %416 = vmatpush1.bf16.msra.mxu0 %v396
    %417 = vmatprep.subr.bf16.mxu0 0
    %418 = vmatpush1.bf16.msra.mxu0 %v397
    %419 = vmatprep.subr.bf16.mxu0 0
    %420 = vmatpush1.bf16.msra.mxu0 %v398
    %421 = vmatprep.subr.bf16.mxu0 0
    %422 = vmatpush1.bf16.msra.mxu0 %v399
    %423 = vmatprep.subr.bf16.mxu0 0
    %424 = vmatpush1.bf16.msra.mxu0 %v400
    %425 = vmatprep.subr.bf16.mxu0 0
    %426 = vmatpush1.bf16.msra.mxu0 0
    %427 = vmatprep.subr.bf16.mxu0 0
    %428 = vmatpush1.bf16.msra.mxu0 0
    %429 = vmatprep.subr.bf16.mxu0 0
    %430 = vmatpush1.bf16.msra.mxu0 0
    %431 = vmatprep.subr.bf16.mxu0 0
    %432 = vmatpush1.bf16.msra.mxu0 0
    %433 = vmatprep.subr.bf16.mxu0 0
    %434 = vmatpush1.bf16.msra.mxu0 0
    %435 = vmatprep.subr.bf16.mxu0 0
    %436 = vmatpush1.bf16.msra.mxu0 0
    %437 = vmatprep.subr.bf16.mxu0 0
    %438 = vmatpush1.bf16.msra.mxu0 0
    %439 = vmatprep.subr.bf16.mxu0 0
    %440 = vmatpush1.bf16.msra.mxu0 0
    %441 = vmatprep.mubr.bf16.mxu0 0
    %442 = vmatmul.mubr.bf16.gmra.mrb[0].mxu0 %v344
    %v443 = vpop.f32.mrb[0].mxu0
    %v444 = vadd.f32 0.0, %v443
    %v445 = vpop.f32.mrb[0].mxu0
    %v446 = vpop.f32.mrb[0].mxu0
    %v447 = vpop.f32.mrb[0].mxu0
    %448 = vdwg.mxu0
    %v449 = vpack.c.bf16 %v444, %v444
    %v450 = vld [vmem:[#allocation5] sm:$0xf]
    %v451 = vld [vmem:[#allocation5 + $0x4] sm:$0xf]
    %v452 = vld [vmem:[#allocation5 + $0x8] sm:$0xf]
    %v453 = vld [vmem:[#allocation5 + $0xc] sm:$0xf]
    %v454 = vld [vmem:[#allocation5 + $0x10] sm:$0xf]
    %v455 = vld [vmem:[#allocation5 + $0x14] sm:$0xf]
    %v456 = vld [vmem:[#allocation5 + $0x18] sm:$0xf]
    %v457 = vld [vmem:[#allocation5 + $0x1c] sm:$0xf]
    %v458 = vld [vmem:[#allocation5 + $0x20] sm:$0xf]
    %v459 = vld [vmem:[#allocation5 + $0x24] sm:$0xf]
    %v460 = vld [vmem:[#allocation5 + $0x28] sm:$0xf]
    %v461 = vld [vmem:[#allocation5 + $0x2c] sm:$0xf]
    %v462 = vld [vmem:[#allocation5 + $0x30] sm:$0xf]
    %v463 = vld [vmem:[#allocation5 + $0x34] sm:$0xf]
    %v464 = vld [vmem:[#allocation5 + $0x38] sm:$0xf]
    %v465 = vld [vmem:[#allocation5 + $0x3c] sm:$0xf]
    %v482 = vunpack.c.l.b16 %v450
    %v483 = vunpack.c.l.b16 %v451
    %v484 = vunpack.c.l.b16 %v452
    %v485 = vunpack.c.l.b16 %v453
    %v486 = vunpack.c.l.b16 %v454
    %v487 = vunpack.c.l.b16 %v455
    %v488 = vunpack.c.l.b16 %v456
    %v489 = vunpack.c.l.b16 %v457
    %v490 = vunpack.c.l.b16 %v458
    %v491 = vunpack.c.l.b16 %v459
    %v492 = vunpack.c.l.b16 %v460
    %v493 = vunpack.c.l.b16 %v461
    %v494 = vunpack.c.l.b16 %v462
    %v495 = vunpack.c.l.b16 %v463
    %v496 = vunpack.c.l.b16 %v464
    %v497 = vunpack.c.l.b16 %v465
    %v498 = vpack.c.b16 %v483, %v482
    %v499 = vpack.c.b16 %v485, %v484
    %v500 = vpack.c.b16 %v487, %v486
    %v501 = vpack.c.b16 %v489, %v488
    %v502 = vpack.c.b16 %v491, %v490
    %v503 = vpack.c.b16 %v493, %v492
    %v504 = vpack.c.b16 %v495, %v494
    %v505 = vpack.c.b16 %v497, %v496
    %514 = vmatprep.subr.bf16.mxu0 0
    %515 = vmatpush1.bf16.xpose.msra.mxu0 %v498
    %516 = vmatprep.subr.bf16.mxu0 0
    %517 = vmatpush1.bf16.xpose.msra.mxu0 %v499
    %518 = vmatprep.subr.bf16.mxu0 0
    %519 = vmatpush1.bf16.xpose.msra.mxu0 %v500
    %520 = vmatprep.subr.bf16.mxu0 0
    %521 = vmatpush1.bf16.xpose.msra.mxu0 %v501
    %522 = vmatprep.subr.bf16.mxu0 0
    %523 = vmatpush1.bf16.xpose.msra.mxu0 %v502
    %524 = vmatprep.subr.bf16.mxu0 0
    %525 = vmatpush1.bf16.xpose.msra.mxu0 %v503
    %526 = vmatprep.subr.bf16.mxu0 0
    %527 = vmatpush1.bf16.xpose.msra.mxu0 %v504
    %528 = vmatprep.subr.bf16.mxu0 0
    %529 = vmatpush1.bf16.xpose.msra.mxu0 %v505
    %530 = vmatprep.subr.bf16.mxu0 0
    %531 = vmatpush1.bf16.xpose.msra.mxu0 0
    %532 = vmatprep.subr.bf16.mxu0 0
    %533 = vmatpush1.bf16.xpose.msra.mxu0 0
    %534 = vmatprep.subr.bf16.mxu0 0
    %535 = vmatpush1.bf16.xpose.msra.mxu0 0
    %536 = vmatprep.subr.bf16.mxu0 0
    %537 = vmatpush1.bf16.xpose.msra.mxu0 0
    %538 = vmatprep.subr.bf16.mxu0 0
    %539 = vmatpush1.bf16.xpose.msra.mxu0 0
    %540 = vmatprep.subr.bf16.mxu0 0
    %541 = vmatpush1.bf16.xpose.msra.mxu0 0
    %542 = vmatprep.subr.bf16.mxu0 0
    %543 = vmatpush1.bf16.xpose.msra.mxu0 0
    %544 = vmatprep.subr.bf16.mxu0 0
    %545 = vmatpush1.bf16.xpose.msra.mxu0 0
    %546 = vmatprep.mubr.bf16.mxu0 0
    %547 = vmatmul.mubr.bf16.gmra.mrb[0].mxu0 %v449
    %v548 = vpop.f32.mrb[0].mxu0
    %v549 = vadd.f32 0.0, %v548
    %v550 = vpop.f32.mrb[0].mxu0
    %v551 = vpop.f32.mrb[0].mxu0
    %v552 = vpop.f32.mrb[0].mxu0
    %553 = vdwg.mxu0
    %v554 = vlaneseq
    %v555 = vand.u32 %v554, 127
    %vm556 = vcmp.lt.s32.totalorder %v555, 8
    %v557 = vsel %vm556, %v549, -3.4028235e+38
    %558 = vmax.xlane.f32.xlu0 %v557
    %v559 = vpop.xlane.xlu0 %558
    %v560 = vsub.f32 %v549, %v559
    %561 = vst [vmem:[#allocation14] sm:$0xff] %v560
    // Predicated region
    $region58: #{tpu_custom_call.1} parent=1 // pred_check
      _
    $region59: #{tpu_custom_call.1} parent=1 // pred_check_branch
      %563 = sbr.rel (0) target = $region61
    $region60: #{tpu_custom_call.1} parent=1 // pred_region
      %s565 = ssub.s32 128, 128
      %566 = vsyncadd [#allocation4], %s565
      %s568 = sshll.u32 [#allocation14], 4
      %s569 = int_to_ptr.vmem [resolvable:$true] %s568
      %571 = dma.vmem_to_hbm [thread:$0]  %s569, 128, %s7, [#allocation4]
    $region61: #{tpu_custom_call.1} parent=1 // pred_fallthru
      _
    // Predicated region
    $region62: #{tpu_custom_call.1} parent=1 // pred_check
      _
    $region63: #{tpu_custom_call.1} parent=1 // pred_check_branch
      %573 = sbr.rel (0) target = $region65
    $region64: #{tpu_custom_call.1} parent=1 // pred_region
      %574 = dma.done [#allocation4], 128
    $region65: #{tpu_custom_call.1} parent=1 // pred_fallthru
      _
    %575 = vsyncpa [#allocation3], 1
    %576 = vsyncpa [#allocation6], 1
    %577 = vsyncpa [#allocation9], 1
    %578 = vsyncpa [#allocation12], 1
    %579 = vsyncpa [#allocation4], 1

</llo_original>
